<compile_context>
chip_gen: v7x
topology: tpu7x:2x2x1
jax: 0.10.0
libtpu: 0.0.40
codegen_flags: <defaults>
</compile_context>

<pallas_src>
import functools

import jax
import jax.numpy as jnp
from jax.experimental import pallas as pl
from jax.experimental.pallas import tpu as pltpu

_NEG_INF = float("-inf")


def _smoothed_ce_kernel(logits_ref, targets_ref, out_ref,
                        m_ref, l_ref, lin_ref, *,
                        epsilon, n_rows, num_classes, tile_n, tile_c, mask_cols):
    i = pl.program_id(0)            # row-tile index  ("parallel")
    c = pl.program_id(1)            # class-tile index ("arbitrary", innermost)
    num_c = pl.num_programs(1)

    x = logits_ref[...].astype(jnp.float32)            # (tile_n, tile_c)
    tgt = targets_ref[...]                              # (tile_n, 1) int32

    # Class ids of this C-tile; target extraction via lane compare (no gather).
    class_ids = c * tile_c + jax.lax.broadcasted_iota(
        jnp.int32, (tile_n, tile_c), 1)
    hit = class_ids == tgt                               # (tile_n, tile_c) bool

    # Fused linear term: (eps/C)*sum(x) + (1-eps)*x[t] in ONE reduction.
    a_miss = epsilon / num_classes
    a_hit = a_miss + (1.0 - epsilon)
    coeff = jnp.where(hit, a_hit, a_miss)

    if mask_cols:
        # Ragged last C-tile: padded lanes hold garbage -> exclude them.
        col_mask = class_ids < num_classes
        x_exp = jnp.where(col_mask, x, _NEG_INF)         # exp(-inf) == 0
        lin_term = jnp.where(col_mask, x * coeff, 0.0)   # select kills NaN*0
    else:
        x_exp = x
        lin_term = x * coeff

    @pl.when(c == 0)
    def _init():
        m_ref[...] = jnp.full((tile_n, 1), _NEG_INF, jnp.float32)
        l_ref[...] = jnp.zeros((tile_n, 1), jnp.float32)
        lin_ref[...] = jnp.zeros((tile_n, 1), jnp.float32)

    # Online (streaming) logsumexp across C tiles.
    m_old = m_ref[...]
    m_new = jnp.maximum(m_old, jnp.max(x_exp, axis=1, keepdims=True))
    l_ref[...] = (l_ref[...] * jnp.exp(m_old - m_new)
                  + jnp.sum(jnp.exp(x_exp - m_new), axis=1, keepdims=True))
    m_ref[...] = m_new
    lin_ref[...] += jnp.sum(lin_term, axis=1, keepdims=True)

    @pl.when(c == num_c - 1)
    def _finalize():
        lse = m_ref[...] + jnp.log(l_ref[...])
        per_row = lse - lin_ref[...]
        # Defensive: zero padded rows of a ragged last row-tile (garbage rows
        # may carry NaN/Inf; select -- not arithmetic -- keeps them out).
        row_ids = i * tile_n + jax.lax.broadcasted_iota(jnp.int32, (tile_n, 1), 0)
        per_row = jnp.where(row_ids < n_rows, per_row, 0.0)
        out_ref[...] = per_row


def smoothed_cross_entropy(logits, targets, epsilon=0.1, *,
                           target_block_bytes=2 * 1024 * 1024,
                           max_tile_c=4096, max_tile_n=1024):
    """logits: (N, C) float array (f32/bf16); targets: (N,) int class ids."""
    n, c = logits.shape
    itemsize = jnp.dtype(logits.dtype).itemsize
    targets_2d = targets.astype(jnp.int32).reshape(n, 1)

    # --- class-dim tiling: whole C if small enough, else a lane-aligned tile
    # (multiple of 128) with online logsumexp across C tiles.
    if c <= max_tile_c:
        tile_c = c
    else:
        tile_c = (max_tile_c // 128) * 128
    num_c_tiles = pl.cdiv(c, tile_c)
    mask_cols = (c % tile_c) != 0

    # --- row-dim tiling: target ~target_block_bytes of logits per grid step
    # (mem-bound kernel; tiny blocks are dominated by ~0.35us/step overhead),
    # clamped so the block stays small relative to VMEM on every generation.
    rows = target_block_bytes // max(1, tile_c * itemsize)
    rows = max(8, min(max_tile_n, rows))
    rows = (rows // 8) * 8
    tile_n = n if n <= rows else rows
    num_row_tiles = pl.cdiv(n, tile_n)

    # VMEM budget: 2x double-buffered input block (HBM dtype) + f32 upcast
    # temporaries + scratch/targets; comfortably inside v7x's 64 MiB.
    block_bytes = tile_n * tile_c * itemsize
    block_f32 = tile_n * tile_c * 4
    vmem_limit = int(min(64 * 1024 * 1024,
                         max(16 * 1024 * 1024,
                             2 * block_bytes + 4 * block_f32 + (1 << 20))))

    kernel = functools.partial(
        _smoothed_ce_kernel, epsilon=float(epsilon), n_rows=n,
        num_classes=c, tile_n=tile_n, tile_c=tile_c, mask_cols=mask_cols)

    per_row = pl.pallas_call(
        kernel,
        out_shape=jax.ShapeDtypeStruct((n, 1), jnp.float32),
        grid_spec=pltpu.PrefetchScalarGridSpec(
            num_scalar_prefetch=0,
            grid=(num_row_tiles, num_c_tiles),
            in_specs=[
                pl.BlockSpec((tile_n, tile_c), lambda i, k: (i, k)),  # logits
                pl.BlockSpec((tile_n, 1), lambda i, k: (i, 0)),       # targets
            ],
            out_specs=pl.BlockSpec((tile_n, 1), lambda i, k: (i, 0)),  # per-row
            scratch_shapes=[pltpu.VMEM((tile_n, 1), jnp.float32)
                            for _ in range(3)],   # running m, l, linear-term
        ),
        compiler_params=pltpu.CompilerParams(
            # Row tiles are independent (per-tile output + per-tile scratch
            # re-init) -> "parallel" unlocks both TCs on v7x; the C axis
            # carries the online-logsumexp state -> "arbitrary".
            dimension_semantics=("parallel", "arbitrary"),
            vmem_limit_bytes=vmem_limit,
        ),
    )(logits, targets_2d)

    # Final mean over N rows: trivially small, done in plain JAX (also avoids
    # the serialized carried-scalar accumulator of the previous version).
    return jnp.sum(per_row) / n


def _smoothed_ce_ref(logits, targets, epsilon=0.1):
    """Pure-JAX reference mirroring the PyTorch module."""
    logp = jax.nn.log_softmax(logits.astype(jnp.float32), axis=-1)
    mean = -jnp.mean(logp, axis=-1)
    nll = -jnp.take_along_axis(
        logp, targets[:, None].astype(jnp.int32), axis=-1)[:, 0]
    return jnp.mean((1.0 - epsilon) * nll + epsilon * mean)


if __name__ == "__main__":
    key = jax.random.PRNGKey(0)
    k1, k2, k3, k4, k5, k6, k7, k8 = jax.random.split(key, 8)

    # Case 1: small batch, f32, single block in both dims.
    N1, C1 = 8, 32
    x1 = jax.random.normal(k1, (N1, C1), dtype=jnp.float32)
    t1 = jax.random.randint(k2, (N1,), 0, C1, dtype=jnp.int32)
    got1 = jax.block_until_ready(smoothed_cross_entropy(x1, t1, epsilon=0.1))
    ref1 = _smoothed_ce_ref(x1, t1, epsilon=0.1)
    assert jnp.allclose(got1, ref1, rtol=1e-3, atol=1e-3), (got1, ref1)

    # Case 2: ragged N, bf16 logits, multiple row tiles ("parallel" axis).
    N2, C2 = 200, 32
    x2 = jax.random.normal(k3, (N2, C2), dtype=jnp.float32).astype(jnp.bfloat16)
    t2 = jax.random.randint(k4, (N2,), 0, C2, dtype=jnp.int32)
    got2 = jax.block_until_ready(
        smoothed_cross_entropy(x2, t2, epsilon=0.1, max_tile_n=64))
    ref2 = _smoothed_ce_ref(x2, t2, epsilon=0.1)
    assert jnp.allclose(got2, ref2, rtol=1e-3, atol=1e-3), (got2, ref2)

    # Case 3: C tiled exactly (online logsumexp across 3 class tiles).
    N3, C3 = 64, 384
    x3 = jax.random.normal(k5, (N3, C3), dtype=jnp.float32)
    t3 = jax.random.randint(k6, (N3,), 0, C3, dtype=jnp.int32)
    got3 = jax.block_until_ready(
        smoothed_cross_entropy(x3, t3, epsilon=0.1, max_tile_c=128))
    ref3 = _smoothed_ce_ref(x3, t3, epsilon=0.1)
    assert jnp.allclose(got3, ref3, rtol=1e-3, atol=1e-3), (got3, ref3)

    # Case 4: ragged C (last class tile masked) + online logsumexp.
    N4, C4 = 40, 200
    x4 = jax.random.normal(k7, (N4, C4), dtype=jnp.float32)
    t4 = jax.random.randint(k8, (N4,), 0, C4, dtype=jnp.int32)
    got4 = jax.block_until_ready(
        smoothed_cross_entropy(x4, t4, epsilon=0.1, max_tile_c=128))
    ref4 = _smoothed_ce_ref(x4, t4, epsilon=0.1)
    assert jnp.allclose(got4, ref4, rtol=1e-3, atol=1e-3), (got4, ref4)

    print("KERNEL_OK")
</pallas_src>

<mosaic_0001>
module attributes {stable_mosaic.version = 11 : i64} {
  func.func @_smoothed_ce_kernel(%arg0: i32, %arg1: i32, %arg2: memref<8x32xf32, #tpu.memory_space<vmem>>, %arg3: memref<8x1xi32, #tpu.memory_space<vmem>>, %arg4: memref<8x1xf32, #tpu.memory_space<vmem>>, %arg5: memref<8x1xf32, #tpu.memory_space<vmem>>, %arg6: memref<8x1xf32, #tpu.memory_space<vmem>>, %arg7: memref<8x1xf32, #tpu.memory_space<vmem>>) attributes {dimension_semantics = [#tpu.dimension_semantics<parallel>, #tpu.dimension_semantics<arbitrary>], iteration_bounds = array<i64: 1, 1>, scalar_prefetch = 0 : i64, scratch_operands = 3 : i64, tpu.core_type = #tpu.core_type<tc>, window_params = [{transform_indices = @transform_0, window_bounds = array<i64: 8, 32>}, {transform_indices = @transform_1, window_bounds = array<i64: 8, 1>}, {transform_indices = @transform_2, window_bounds = array<i64: 8, 1>}]} {
    %c0 = arith.constant 0 : index
    %c0_0 = arith.constant 0 : index
    %0 = vector.load %arg2[%c0, %c0_0] : memref<8x32xf32, #tpu.memory_space<vmem>>, vector<8x32xf32>
    %c0_1 = arith.constant 0 : index
    %c0_2 = arith.constant 0 : index
    %1 = vector.load %arg3[%c0_1, %c0_2] : memref<8x1xi32, #tpu.memory_space<vmem>>, vector<8x1xi32>
    %c32_i32 = arith.constant 32 : i32
    %2 = arith.muli %arg1, %c32_i32 : i32
    %3 = tpu.iota {dimensions = array<i32: 1>} : vector<8x32xi32>
    %4 = vector.broadcast %2 : i32 to vector<8x32xi32>
    %5 = arith.addi %4, %3 : vector<8x32xi32>
    %6 = vector.broadcast %1 : vector<8x1xi32> to vector<8x32xi32>
    %7 = arith.cmpi eq, %5, %6 : vector<8x32xi32>
    %cst = arith.constant 0.903124988 : f32
    %cst_3 = arith.constant 3.125000e-03 : f32
    %8 = vector.broadcast %cst : f32 to vector<8x32xf32>
    %9 = vector.broadcast %cst_3 : f32 to vector<8x32xf32>
    %10 = arith.select %7, %8, %9 : vector<8x32xi1>, vector<8x32xf32>
    %11 = arith.mulf %0, %10 : vector<8x32xf32>
    %c0_i32 = arith.constant 0 : i32
    %12 = arith.cmpi eq, %arg1, %c0_i32 : i32
    %13 = arith.extui %12 : i1 to i32
    %c0_i32_4 = arith.constant 0 : i32
    %14 = arith.cmpi ne, %13, %c0_i32_4 : i32
    scf.if %14 {
      %cst_22 = arith.constant 0xFF800000 : f32
      %39 = vector.broadcast %cst_22 : f32 to vector<8x1xf32>
      %c0_23 = arith.constant 0 : index
      %c0_24 = arith.constant 0 : index
      %40 = vector.load %arg5[%c0_23, %c0_24] : memref<8x1xf32, #tpu.memory_space<vmem>>, vector<8x1xf32>
      tpu.vector_store %arg5[%c0_23, %c0_24], %39 {strides = array<i32>} : memref<8x1xf32, #tpu.memory_space<vmem>>, vector<8x1xf32>,
      %cst_25 = arith.constant 0.000000e+00 : f32
      %41 = vector.broadcast %cst_25 : f32 to vector<8x1xf32>
      %c0_26 = arith.constant 0 : index
      %c0_27 = arith.constant 0 : index
      %42 = vector.load %arg6[%c0_26, %c0_27] : memref<8x1xf32, #tpu.memory_space<vmem>>, vector<8x1xf32>
      tpu.vector_store %arg6[%c0_26, %c0_27], %41 {strides = array<i32>} : memref<8x1xf32, #tpu.memory_space<vmem>>, vector<8x1xf32>,
      %cst_28 = arith.constant 0.000000e+00 : f32
      %43 = vector.broadcast %cst_28 : f32 to vector<8x1xf32>
      %c0_29 = arith.constant 0 : index
      %c0_30 = arith.constant 0 : index
      %44 = vector.load %arg7[%c0_29, %c0_30] : memref<8x1xf32, #tpu.memory_space<vmem>>, vector<8x1xf32>
      tpu.vector_store %arg7[%c0_29, %c0_30], %43 {strides = array<i32>} : memref<8x1xf32, #tpu.memory_space<vmem>>, vector<8x1xf32>,
    } else {
    }
    %c0_5 = arith.constant 0 : index
    %c0_6 = arith.constant 0 : index
    %15 = vector.load %arg5[%c0_5, %c0_6] : memref<8x1xf32, #tpu.memory_space<vmem>>, vector<8x1xf32>
    %cst_7 = arith.constant dense<0xFF800000> : vector<8xf32>
    %16 = vector.multi_reduction <maximumf>, %0, %cst_7 [1] : vector<8x32xf32> to vector<8xf32>
    %17 = vector.shape_cast %16 : vector<8xf32> to vector<8x1xf32>
    %18 = arith.maximumf %15, %17 : vector<8x1xf32>
    %c0_8 = arith.constant 0 : index
    %c0_9 = arith.constant 0 : index
    %19 = vector.load %arg6[%c0_8, %c0_9] : memref<8x1xf32, #tpu.memory_space<vmem>>, vector<8x1xf32>
    %20 = arith.subf %15, %18 : vector<8x1xf32>
    %21 = math.exp %20 : vector<8x1xf32>
    %22 = arith.mulf %19, %21 : vector<8x1xf32>
    %23 = vector.broadcast %18 : vector<8x1xf32> to vector<8x32xf32>
    %24 = arith.subf %0, %23 : vector<8x32xf32>
    %25 = math.exp %24 : vector<8x32xf32>
    %cst_10 = arith.constant dense<0.000000e+00> : vector<8xf32>
    %26 = vector.multi_reduction <add>, %25, %cst_10 [1] : vector<8x32xf32> to vector<8xf32>
    %27 = vector.shape_cast %26 : vector<8xf32> to vector<8x1xf32>
    %28 = arith.addf %22, %27 : vector<8x1xf32>
    %c0_11 = arith.constant 0 : index
    %c0_12 = arith.constant 0 : index
    %29 = vector.load %arg6[%c0_11, %c0_12] : memref<8x1xf32, #tpu.memory_space<vmem>>, vector<8x1xf32>
    tpu.vector_store %arg6[%c0_11, %c0_12], %28 {strides = array<i32>} : memref<8x1xf32, #tpu.memory_space<vmem>>, vector<8x1xf32>,
    %c0_13 = arith.constant 0 : index
    %c0_14 = arith.constant 0 : index
    %30 = vector.load %arg5[%c0_13, %c0_14] : memref<8x1xf32, #tpu.memory_space<vmem>>, vector<8x1xf32>
    tpu.vector_store %arg5[%c0_13, %c0_14], %18 {strides = array<i32>} : memref<8x1xf32, #tpu.memory_space<vmem>>, vector<8x1xf32>,
    %c0_15 = arith.constant 0 : index
    %c0_16 = arith.constant 0 : index
    %31 = vector.load %arg7[%c0_15, %c0_16] : memref<8x1xf32, #tpu.memory_space<vmem>>, vector<8x1xf32>
    %cst_17 = arith.constant dense<0.000000e+00> : vector<8xf32>
    %32 = vector.multi_reduction <add>, %11, %cst_17 [1] : vector<8x32xf32> to vector<8xf32>
    %33 = vector.shape_cast %32 : vector<8xf32> to vector<8x1xf32>
    %34 = arith.addf %31, %33 : vector<8x1xf32>
    %c0_18 = arith.constant 0 : index
    %c0_19 = arith.constant 0 : index
    %35 = vector.load %arg7[%c0_18, %c0_19] : memref<8x1xf32, #tpu.memory_space<vmem>>, vector<8x1xf32>
    tpu.vector_store %arg7[%c0_18, %c0_19], %34 {strides = array<i32>} : memref<8x1xf32, #tpu.memory_space<vmem>>, vector<8x1xf32>,
    %c0_i32_20 = arith.constant 0 : i32
    %36 = arith.cmpi eq, %arg1, %c0_i32_20 : i32
    %37 = arith.extui %36 : i1 to i32
    %c0_i32_21 = arith.constant 0 : i32
    %38 = arith.cmpi ne, %37, %c0_i32_21 : i32
    scf.if %38 {
      %c0_22 = arith.constant 0 : index
      %c0_23 = arith.constant 0 : index
      %39 = vector.load %arg5[%c0_22, %c0_23] : memref<8x1xf32, #tpu.memory_space<vmem>>, vector<8x1xf32>
      %c0_24 = arith.constant 0 : index
      %c0_25 = arith.constant 0 : index
      %40 = vector.load %arg6[%c0_24, %c0_25] : memref<8x1xf32, #tpu.memory_space<vmem>>, vector<8x1xf32>
      %41 = math.log %40 : vector<8x1xf32>
      %42 = arith.addf %39, %41 : vector<8x1xf32>
      %c0_26 = arith.constant 0 : index
      %c0_27 = arith.constant 0 : index
      %43 = vector.load %arg7[%c0_26, %c0_27] : memref<8x1xf32, #tpu.memory_space<vmem>>, vector<8x1xf32>
      %44 = arith.subf %42, %43 : vector<8x1xf32>
      %c8_i32 = arith.constant 8 : i32
      %45 = arith.muli %arg0, %c8_i32 : i32
      %46 = tpu.iota {dimensions = array<i32: 0>} : vector<8x1xi32>
      %47 = vector.broadcast %45 : i32 to vector<8x1xi32>
      %48 = arith.addi %47, %46 : vector<8x1xi32>
      %c8_i32_28 = arith.constant 8 : i32
      %49 = vector.broadcast %c8_i32_28 : i32 to vector<8x1xi32>
      %50 = arith.cmpi slt, %48, %49 : vector<8x1xi32>
      %cst_29 = arith.constant 0.000000e+00 : f32
      %51 = vector.broadcast %cst_29 : f32 to vector<8x1xf32>
      %52 = arith.select %50, %44, %51 : vector<8x1xi1>, vector<8x1xf32>
      %c0_30 = arith.constant 0 : index
      %c0_31 = arith.constant 0 : index
      %53 = vector.load %arg4[%c0_30, %c0_31] : memref<8x1xf32, #tpu.memory_space<vmem>>, vector<8x1xf32>
      tpu.vector_store %arg4[%c0_30, %c0_31], %52 {strides = array<i32>} : memref<8x1xf32, #tpu.memory_space<vmem>>, vector<8x1xf32>,
    } else {
    }
    return
  }
  func.func @transform_0(%arg0: i32, %arg1: i32) -> (i32, i32) {
    %c0_i32 = arith.constant 0 : i32
    return %arg0, %arg1 : i32, i32
  }
  func.func @transform_1(%arg0: i32, %arg1: i32) -> (i32, i32) {
    %c0_i32 = arith.constant 0 : i32
    %c0_i32_0 = arith.constant 0 : i32
    return %arg0, %c0_i32 : i32, i32
  }
  func.func @transform_2(%arg0: i32, %arg1: i32) -> (i32, i32) {
    %c0_i32 = arith.constant 0 : i32
    %c0_i32_0 = arith.constant 0 : i32
    return %arg0, %c0_i32 : i32, i32
  }
}

</mosaic_0001>

<llo_original>
// kernel: tpu_custom_call.1
$region0: #{tpu_custom_call.1}
  #allocation0 [shape = 'u32[]', space=smem, size = 0x4, offset = 0x4, fixed_abs, tag = 'smem constant byte address 0x4 - core index']
  #allocation1 [shape = 'u32[144,128]{1,0:T(1,128)}', space=vmem, size = 0x12000, scoped, tag = 'internal scratch']
  #allocation2 [shape = 'f32[8,1]{1,0:T(8,128)}', space=vmem, size = 0x1000, scoped, tag = 'scratch operand']
  #allocation3 [shape = 'f32[8,1]{1,0:T(8,128)}', space=vmem, size = 0x1000, scoped, tag = 'scratch operand']
  #allocation4 [shape = 'f32[8,1]{1,0:T(8,128)}', space=vmem, size = 0x1000, scoped, tag = 'scratch operand']
  %s0 = inlined_call_operand.vmem [shape: f32[8,32], index: 0, kind: input, shape index: {}]
  %s1 = inlined_call_operand.vmem [shape: s32[8,1], index: 1, kind: input, shape index: {}]
  %s2 = inlined_call_operand.vmem [shape: f32[8,1], index: 2, kind: output, shape index: {}]
  %s3 = sld [smem:[#allocation0]]
  $region26: #{tpu_custom_call.1} parent=0
    _
  %s5 = ssub.s32 1, %s3
  %s6 = scalar_select 0, %s5, %s3
  // Predicated region
  $region2: #{tpu_custom_call.1} parent=0 // pred_check
    _
  $region3: #{tpu_custom_call.1} parent=0 // pred_check_branch
    %8 = sbr.rel (0) target = $region5
  $region4: #{tpu_custom_call.1} parent=0 // pred_region
    _
  $region5: #{tpu_custom_call.1} parent=0 // pred_fallthru
    _
  // Predicated region
  $region6: #{tpu_custom_call.1} parent=0 // pred_check
    _
  $region7: #{tpu_custom_call.1} parent=0 // pred_check_branch
    %10 = sbr.rel (0) target = $region9
  $region8: #{tpu_custom_call.1} parent=0 // pred_region
    _
  $region9: #{tpu_custom_call.1} parent=0 // pred_fallthru
    _
  %v11 = vld [vmem:[%s0] sm:$0xff]
  %v12 = vld [vmem:[%s1] sm:$0xff]
  %s13 = smul.u32 0, 32
  %v14 = vlaneseq
  %v15 = vand.u32 %v14, 127
  %v16 = vstv %s13
  %v17 = vadd.s32 %v16, %v15
  %18 = vset.pattern.permute.xlu0 0
  %19 = vperm.xlu0 %18, %v12
  %v20 = vpop.permute.xlu0 %19
  %vm21 = vcmp.eq.s32.totalorder %v17, %v20
  %v22 = vsel %vm21, 0.903125, 0.003125
  %v23 = vmul.f32 %v11, %v22
  %p24 = scmp.eq.s32.totalorder 0, 0
  // Predicated region
  $region10: #{tpu_custom_call.1} parent=0 // pred_check
    %p25 = pneg %p24
  $region11: #{tpu_custom_call.1} parent=0 // pred_check_branch
    %27 = sbr.rel (%p25) target = $region13
  $region12: #{tpu_custom_call.1} parent=0 // pred_region
    %vm28 = vcmask 7168
    %29 = vst.msk [vmem:[#allocation2] sm:$0xff] %vm28, -inf
    %30 = vst.msk [vmem:[#allocation3] sm:$0xff] %vm28, 0.0
    %31 = vst.msk [vmem:[#allocation4] sm:$0xff] %vm28, 0.0
  $region13: #{tpu_custom_call.1} parent=0 // pred_fallthru
    _
  %v32 = vld [vmem:[#allocation2] sm:$0xff]
  %vm33 = vcmask 261120
  %v34 = vsel %vm33, %v11, -inf
  %35 = vmax.xlane.f32.xlu0 %v34
  %v36 = vpop.xlane.xlu0 %35
  %v37 = vmax.f32 %v32, %v36
  %v38 = vld [vmem:[#allocation3] sm:$0xff]
  %v39 = vsub.f32 %v32, %v37
  %v40 = vmul.f32 %v39, 1.442695
  %v41 = vpow.pop %v40
  %v42 = vmul.f32 %v38, %v41
  %44 = vset.pattern.permute.xlu0 0
  %45 = vperm.xlu0 %44, %v37
  %v46 = vpop.permute.xlu0 %45
  %v48 = vsub.f32 %v11, %v46
  %v49 = vmul.f32 %v48, 1.442695
  %v50 = vpow.pop %v49
  %v51 = vsel %vm33, %v50, 0.0
  %52 = vadd.xlane.f32.xlu0 %v51
  %v53 = vpop.xlane.xlu0 %52
  %v54 = vadd.f32 %v42, %v53
  %vm55 = vcmask 7168
  %56 = vst.msk [vmem:[#allocation3] sm:$0xff] %vm55, %v54
  %57 = vst.msk [vmem:[#allocation2] sm:$0xff] %vm55, %v37
  %v58 = vld [vmem:[#allocation4] sm:$0xff]
  %v59 = vsel %vm33, %v23, 0.0
  %60 = vadd.xlane.f32.xlu0 %v59
  %v61 = vpop.xlane.xlu0 %60
  %v62 = vadd.f32 %v58, %v61
  %63 = vst.msk [vmem:[#allocation4] sm:$0xff] %vm55, %v62
  // Predicated region
  $region14: #{tpu_custom_call.1} parent=0 // pred_check
    %p64 = pneg %p24
  $region15: #{tpu_custom_call.1} parent=0 // pred_check_branch
    %66 = sbr.rel (%p64) target = $region17
  $region16: #{tpu_custom_call.1} parent=0 // pred_region
    %v67 = vld [vmem:[#allocation2] sm:$0xff]
    %v68 = vld [vmem:[#allocation3] sm:$0xff]
    %v69 = vlog2.pop %v68
    %v70 = vmul.f32 %v69, 0.6931472
    %v71 = vadd.f32 %v67, %v70
    %v72 = vld [vmem:[#allocation4] sm:$0xff]
    %v73 = vsub.f32 %v71, %v72
    %s74 = smul.u32 0, 8
    %v75 = vlaneseq
    %v76 = vshrl.u32 %v75, 7
    %v77 = vstv %s74
    %v78 = vadd.s32 %v77, %v76
    %vm79 = vcmp.lt.s32.totalorder %v78, 8
    %v80 = vsel %vm79, %v73, 0.0
    %81 = vst.msk [vmem:[%s2] sm:$0xff] %vm55, %v80
  $region17: #{tpu_custom_call.1} parent=0 // pred_fallthru
    _
  // Predicated region
  $region18: #{tpu_custom_call.1} parent=0 // pred_check
    _
  $region19: #{tpu_custom_call.1} parent=0 // pred_check_branch
    %83 = sbr.rel (0) target = $region21
  $region20: #{tpu_custom_call.1} parent=0 // pred_region
    _
  $region21: #{tpu_custom_call.1} parent=0 // pred_fallthru
    _
  // Predicated region
  $region22: #{tpu_custom_call.1} parent=0 // pred_check
    _
  $region23: #{tpu_custom_call.1} parent=0 // pred_check_branch
    %85 = sbr.rel (0) target = $region25
  $region24: #{tpu_custom_call.1} parent=0 // pred_region
    _
  $region25: #{tpu_custom_call.1} parent=0 // pred_fallthru
    _

</llo_original>
